<compile_context>
chip_gen: v5e
topology: v5e:2x2
jax: 0.10.0
libtpu: 0.0.40
codegen_flags: <defaults>
</compile_context>

<pallas_src>
import functools

import jax
import jax.numpy as jnp
from jax.experimental import pallas as pl
from jax.experimental.pallas import tpu as pltpu


# --------------------------------------------------------------------------- #
# Kernel                                                                      #
# --------------------------------------------------------------------------- #
def _vmf_vq_kernel(x_ref, cbn_ref, kappa_ref, q_ref, part_ref, *,
                   n_total, tile_n, mask_rows):
    """One grid step: a (tile_n, D) slab of raw encoder sub-vectors."""
    x = x_ref[...].astype(jnp.float32)        # (TN, D) raw sub-vectors (upcast in vregs)
    cbn = cbn_ref[...]                        # (K, D) unit-norm codebook (normalized once)
    kappa = kappa_ref[0]                      # scalar concentration (SMEM)

    # F.normalize (eps=1e-12) with kappa folded in: one rsqrt per row; the
    # kappa scaling costs N*D VPU ops here instead of N*K on the logits.
    ss = jnp.sum(x * x, axis=1, keepdims=True)                       # (TN, 1)
    scale = kappa * jax.lax.rsqrt(jnp.maximum(ss, 1e-24))            # (TN, 1)
    xs = x * scale                                                   # (TN, D)

    # vMF logits (kappa already applied).  Contract the LAST dims of both
    # operands -> no in-kernel codebook transpose; single MXU matmul.
    logit = jax.lax.dot_general(xs, cbn, (((1,), (1,)), ((), ())),
                                preferred_element_type=jnp.float32)  # (TN, K)

    # Row softmax statistics without materializing p / log p:
    #   sum_k p*logp = (sum_k e*t)/s - log(s),   t = logit - m, e = exp(t).
    m = jnp.max(logit, axis=1, keepdims=True)                        # (TN, 1)
    t = logit - m                                                    # (TN, K)
    e = jnp.exp(t)                                                   # (TN, K)
    s = jnp.sum(e, axis=1, keepdims=True)                            # (TN, 1)
    inv_s = 1.0 / s                                                  # per-row divide only
    row_kd = jnp.sum(e * t, axis=1, keepdims=True) * inv_s - jnp.log(s)

    # Deterministic quantization: reuse the softmax row max for the one-hot
    # (t == 0 exactly at the max element); one MXU matmul selects the rows.
    onehot = (t == 0.0).astype(jnp.float32)                          # (TN, K)
    q = jax.lax.dot_general(onehot, cbn, (((1,), (0,)), ((), ())),
                            preferred_element_type=jnp.float32)      # (TN, D)
    q_ref[...] = q.astype(q_ref.dtype)

    row_kc = jnp.sum(x * (x - q), axis=1, keepdims=True)             # (TN, 1)

    if mask_rows:
        # Pad-and-mask path (only traced when tile_n does not divide N).
        row0 = pl.program_id(0) * tile_n
        rid = jax.lax.broadcasted_iota(jnp.int32, (x.shape[0], 1), 0)
        valid = ((row0 + rid) < n_total).astype(jnp.float32)         # (TN, 1)
        onehot = onehot * valid
        row_kd = row_kd * valid
        row_kc = row_kc * valid                                      # (zero x anyway)

    # Merge all per-tile partials into ONE lane-wide output row-block:
    #   sublane 0: one-hot counts, sublane 1: sum p*logp, sublane 2: kappa*kc.
    counts = jnp.sum(onehot, axis=0, keepdims=True)                  # (1, K)
    kd = jnp.sum(row_kd, keepdims=True)                              # (1, 1)
    kc = kappa * jnp.sum(row_kc, keepdims=True)                      # (1, 1)
    k_sz = counts.shape[1]
    sub = jax.lax.broadcasted_iota(jnp.int32, (8, k_sz), 0)
    part = (jnp.where(sub == 0, counts, 0.0)
            + jnp.where(sub == 1, kd, 0.0)
            + jnp.where(sub == 2, kc, 0.0))
    part_ref[...] = part[None]                                       # (1, 8, K)


# --------------------------------------------------------------------------- #
# Tile / VMEM sizing helpers                                                  #
# --------------------------------------------------------------------------- #
def _vmem_capacity_bytes():
    try:
        return int(pltpu.get_tpu_info().vmem_capacity_bytes)
    except Exception:
        # v7x has the smallest per-core VMEM (64 MiB) -> conservative default.
        return 64 * 1024 * 1024


def _lane_pad(v):
    return ((max(int(v), 1) + 127) // 128) * 128


def _pick_tile_n(n, d, k, vmem_budget):
    """Largest legal row-tile under an honest per-row VMEM budget."""
    # Per-row f32 bytes:
    #  * x-in and q-out DMA buffers: lane-padded (D -> >=128 lanes), double-buffered
    #  * ~4 live (row, K) compute temporaries (t, e, e*t, onehot)
    #  * a few D-wide row values (x, xs, q) in vregs / spill
    per_row = 4 * (2 * 2 * _lane_pad(d) + 4 * k + 3 * _lane_pad(d))
    cb_bytes = 4 * k * _lane_pad(d) * 2          # codebook copies (worst case)
    avail = max(vmem_budget - cb_bytes - (2 << 20), vmem_budget // 4)
    cap = max(64, min(2048, avail // max(per_row, 1)))
    cap8 = max(8, (cap // 8) * 8)
    if n <= cap8:
        if n >= 1024:
            # Keep >= 2 steps on the "parallel" axis so v7x's 2 TCs both work.
            half = (((n + 1) // 2 + 7) // 8) * 8
            return max(8, min(half, cap8))
        return n                                  # single grid step for tiny N
    return cap8                                   # pad-and-mask handles remainders


# --------------------------------------------------------------------------- #
# Wrapper (forward pass of the module, deterministic branch)                  #
# --------------------------------------------------------------------------- #
def vmf_vector_quantizer_forward(z_from_encoder, kappa_q, codebook, dim_dict,
                                 *, tile_n=None):
    """Deterministic (flg_train=False, flg_quant_det=True) forward of VmfVectorQuantizer.

    Returns (z_to_decoder, loss, perplexity), matching the PyTorch module.
    """
    bs, seq_len, hidden = z_from_encoder.shape
    k, d = codebook.shape
    assert d == dim_dict and hidden % d == 0
    n = bs * seq_len * (hidden // d)

    # Hoisted out of the grid loop: codebook normalization happens exactly once.
    cbf = codebook.astype(jnp.float32)
    cb_norm = cbf / jnp.maximum(
        jnp.sqrt(jnp.sum(cbf * cbf, axis=1, keepdims=True)), 1e-12)

    # Keep the boundary dtype: no forced f32 copy of the main tensor.
    flat = z_from_encoder.reshape(n, d)
    kappa_arr = jnp.asarray(kappa_q, dtype=jnp.float32).reshape(1)

    vmem_limit = min(int(_vmem_capacity_bytes() * 3 // 4), 96 * 1024 * 1024)

    if tile_n is None:
        tile_n = _pick_tile_n(n, d, k, vmem_limit)
    tile_n = int(min(tile_n, n))
    if tile_n < n and tile_n % 8 != 0:
        tile_n = max(8, (tile_n // 8) * 8)

    n_tiles = -(-n // tile_n)
    n_pad = n_tiles * tile_n
    mask_rows = n_pad != n
    if mask_rows:
        flat = jnp.pad(flat, ((0, n_pad - n), (0, 0)))

    # Grid-invariant codebook: single-buffer it once it is VMEM-significant.
    cb_spec_kwargs = {}
    if 4 * k * _lane_pad(d) > (1 << 20):
        cb_spec_kwargs = dict(pipeline_mode=pl.Buffered(1))
    cb_spec = pl.BlockSpec((k, d), lambda i: (0, 0), **cb_spec_kwargs)

    kernel = functools.partial(_vmf_vq_kernel, n_total=n, tile_n=tile_n,
                               mask_rows=mask_rows)

    out_shapes = (
        jax.ShapeDtypeStruct((n_pad, d), z_from_encoder.dtype),   # quantized sub-vectors
        jax.ShapeDtypeStruct((n_tiles, 8, k), jnp.float32),       # merged per-tile partials
    )

    q_flat, parts = pl.pallas_call(
        kernel,
        out_shape=out_shapes,
        grid_spec=pltpu.PrefetchScalarGridSpec(
            num_scalar_prefetch=0,
            grid=(n_tiles,),
            in_specs=[
                pl.BlockSpec((tile_n, d), lambda i: (i, 0)),   # encoder sub-vector tile
                cb_spec,                                        # normalized codebook
                pl.BlockSpec(memory_space=pltpu.SMEM),          # kappa scalar
            ],
            out_specs=[
                pl.BlockSpec((tile_n, d), lambda i: (i, 0)),
                pl.BlockSpec((1, 8, k), lambda i: (i, 0, 0)),
            ],
        ),
        compiler_params=pltpu.CompilerParams(
            dimension_semantics=("parallel",),   # no cross-tile deps -> v7x megacore split
            vmem_limit_bytes=vmem_limit),
    )(flat, cb_norm, kappa_arr)

    # Tiny O(n_tiles * K) final reductions in plain XLA.
    counts = jnp.sum(parts[:, 0, :], axis=0)                   # (K,)
    kd_sum = jnp.sum(parts[:, 1, 0])                            # sum p*logp
    kc_sum = jnp.sum(parts[:, 2, 0])                            # kappa * sum x*(x-q)

    avg_probs = counts / n
    perplexity = jnp.exp(-jnp.sum(avg_probs * jnp.log(avg_probs + 1e-7)))
    loss = kd_sum / bs + kc_sum / bs

    if mask_rows:
        q_flat = q_flat[:n]
    z_to_decoder = q_flat.reshape(bs, seq_len, hidden)
    return z_to_decoder, loss, perplexity


# --------------------------------------------------------------------------- #
# Pure-JAX reference (mirror of the PyTorch module, deterministic branch)     #
# --------------------------------------------------------------------------- #
def _reference_vmf_det(z, kappa_q, codebook, dim_dict):
    bs, seq_len, hidden = z.shape
    k, d = codebook.shape
    zp = z.reshape(bs, seq_len, hidden // d, d)
    zn = zp / jnp.maximum(jnp.sqrt(jnp.sum(zp * zp, axis=-1, keepdims=True)), 1e-12)
    cbn = codebook / jnp.maximum(
        jnp.sqrt(jnp.sum(codebook * codebook, axis=-1, keepdims=True)), 1e-12)
    flat = zn.reshape(-1, d)
    logit = kappa_q * jnp.einsum("nd,kd->nk", flat, cbn,
                                 precision=jax.lax.Precision.HIGHEST)
    probs = jax.nn.softmax(logit, axis=-1)
    logprobs = jax.nn.log_softmax(logit, axis=-1)
    idx = jnp.argmax(logit, axis=1)
    enc_hard = jax.nn.one_hot(idx, k, dtype=codebook.dtype)
    avg_probs = jnp.mean(enc_hard, axis=0)
    zq = cbn[idx].reshape(bs, seq_len, hidden)
    kld_discrete = jnp.sum(probs * logprobs) / bs
    kld_continuous = jnp.mean(jnp.sum(z * (z - zq) * kappa_q, axis=(1, 2)))
    loss = kld_discrete + kld_continuous
    perplexity = jnp.exp(-jnp.sum(avg_probs * jnp.log(avg_probs + 1e-7)))
    return zq, loss, perplexity


if __name__ == "__main__":
    size_dict = 16          # K (codebook size)
    dim_dict = 8            # D (sub-vector dim)
    kappa_q = 6.5
    bs, seq_len, hidden = 2, 8, 32      # hidden = 4 * dim_dict -> N = 64 sub-vectors

    key = jax.random.PRNGKey(0)
    k_z, k_cb = jax.random.split(key)
    z = jax.random.normal(k_z, (bs, seq_len, hidden), dtype=jnp.float32)
    codebook = jax.random.normal(k_cb, (size_dict, dim_dict), dtype=jnp.float32)

    z_to_dec, loss, ppl = jax.block_until_ready(
        vmf_vector_quantizer_forward(z, kappa_q, codebook, dim_dict))

    r_zq, r_loss, r_ppl = _reference_vmf_det(z, kappa_q, codebook, dim_dict)

    assert jnp.allclose(z_to_dec, r_zq, atol=1e-4, rtol=1e-4), "z_to_decoder mismatch"
    assert jnp.allclose(loss, r_loss, atol=1e-3, rtol=1e-4), "loss mismatch"
    assert jnp.allclose(ppl, r_ppl, atol=1e-3, rtol=1e-4), "perplexity mismatch"

    print("KERNEL_OK")
</pallas_src>

<mosaic_0001>
module attributes {stable_mosaic.version = 11 : i64} {
  func.func @_vmf_vq_kernel(%arg0: i32, %arg1: memref<64x8xf32, #tpu.memory_space<vmem>>, %arg2: memref<16x8xf32, #tpu.memory_space<vmem>>, %arg3: memref<1xf32, #tpu.memory_space<smem>>, %arg4: memref<64x8xf32, #tpu.memory_space<vmem>>, %arg5: memref<1x8x16xf32, #tpu.memory_space<vmem>>) attributes {dimension_semantics = [#tpu.dimension_semantics<parallel>], iteration_bounds = array<i64: 1>, scalar_prefetch = 0 : i64, scratch_operands = 0 : i64, tpu.core_type = #tpu.core_type<tc>, window_params = [{transform_indices = @transform_0, window_bounds = array<i64: 64, 8>}, {pipeline_mode = #tpu.pipeline_mode<synchronous>, transform_indices = @transform_1, window_bounds = array<i64: 16, 8>}, {transform_indices = @transform_2, window_bounds = array<i64: 1>}, {transform_indices = @transform_3, window_bounds = array<i64: 64, 8>}, {transform_indices = @transform_4, window_bounds = array<i64: 1, 8, 16>}]} {
    %c0 = arith.constant 0 : index
    %c0_0 = arith.constant 0 : index
    %0 = vector.load %arg1[%c0, %c0_0] : memref<64x8xf32, #tpu.memory_space<vmem>>, vector<64x8xf32>
    %c0_1 = arith.constant 0 : index
    %c0_2 = arith.constant 0 : index
    %1 = vector.load %arg2[%c0_1, %c0_2] : memref<16x8xf32, #tpu.memory_space<vmem>>, vector<16x8xf32>
    %c0_3 = arith.constant 0 : index
    %2 = memref.load %arg3[%c0_3] : memref<1xf32, #tpu.memory_space<smem>>
    %3 = arith.mulf %0, %0 : vector<64x8xf32>
    %cst = arith.constant dense<0.000000e+00> : vector<64xf32>
    %4 = vector.multi_reduction <add>, %3, %cst [1] : vector<64x8xf32> to vector<64xf32>
    %5 = vector.shape_cast %4 : vector<64xf32> to vector<64x1xf32>
    %cst_4 = arith.constant 1.000000e-24 : f32
    %6 = vector.broadcast %cst_4 : f32 to vector<64x1xf32>
    %7 = arith.maximumf %5, %6 : vector<64x1xf32>
    %8 = math.rsqrt %7 : vector<64x1xf32>
    %9 = vector.broadcast %2 : f32 to vector<64x1xf32>
    %10 = arith.mulf %9, %8 : vector<64x1xf32>
    %11 = vector.broadcast %10 : vector<64x1xf32> to vector<64x8xf32>
    %12 = arith.mulf %0, %11 : vector<64x8xf32>
    %cst_5 = arith.constant dense<0.000000e+00> : vector<64x16xf32>
    %13 = tpu.matmul %12, %1, %cst_5 {dimension_numbers = #tpu.dot_dimension_numbers<[1], [1], [0], [0], [0, 0, 1, 0], [], []>} : vector<64x8xf32>, vector<16x8xf32>, vector<64x16xf32> -> vector<64x16xf32>
    %cst_6 = arith.constant dense<0xFF800000> : vector<64xf32>
    %14 = vector.multi_reduction <maximumf>, %13, %cst_6 [1] : vector<64x16xf32> to vector<64xf32>
    %15 = vector.shape_cast %14 : vector<64xf32> to vector<64x1xf32>
    %16 = vector.broadcast %15 : vector<64x1xf32> to vector<64x16xf32>
    %17 = arith.subf %13, %16 : vector<64x16xf32>
    %18 = math.exp %17 : vector<64x16xf32>
    %cst_7 = arith.constant dense<0.000000e+00> : vector<64xf32>
    %19 = vector.multi_reduction <add>, %18, %cst_7 [1] : vector<64x16xf32> to vector<64xf32>
    %20 = vector.shape_cast %19 : vector<64xf32> to vector<64x1xf32>
    %cst_8 = arith.constant 1.000000e+00 : f32
    %21 = vector.broadcast %cst_8 : f32 to vector<64x1xf32>
    %22 = arith.divf %21, %20 : vector<64x1xf32>
    %23 = arith.mulf %18, %17 : vector<64x16xf32>
    %cst_9 = arith.constant dense<0.000000e+00> : vector<64xf32>
    %24 = vector.multi_reduction <add>, %23, %cst_9 [1] : vector<64x16xf32> to vector<64xf32>
    %25 = vector.shape_cast %24 : vector<64xf32> to vector<64x1xf32>
    %26 = arith.mulf %25, %22 : vector<64x1xf32>
    %27 = math.log %20 : vector<64x1xf32>
    %28 = arith.subf %26, %27 : vector<64x1xf32>
    %cst_10 = arith.constant 0.000000e+00 : f32
    %29 = vector.broadcast %cst_10 : f32 to vector<64x16xf32>
    %30 = arith.cmpf oeq, %17, %29 : vector<64x16xf32>
    %31 = arith.extui %30 : vector<64x16xi1> to vector<64x16xi32>
    %32 = arith.sitofp %31 : vector<64x16xi32> to vector<64x16xf32>
    %cst_11 = arith.constant dense<0.000000e+00> : vector<64x8xf32>
    %33 = tpu.matmul %32, %1, %cst_11 {dimension_numbers = #tpu.dot_dimension_numbers<[1], [0], [0], [1], [0, 0, 1, 1], [], []>} : vector<64x16xf32>, vector<16x8xf32>, vector<64x8xf32> -> vector<64x8xf32>
    %c0_12 = arith.constant 0 : index
    %c0_13 = arith.constant 0 : index
    %34 = vector.load %arg4[%c0_12, %c0_13] : memref<64x8xf32, #tpu.memory_space<vmem>>, vector<64x8xf32>
    tpu.vector_store %arg4[%c0_12, %c0_13], %33 {strides = array<i32>} : memref<64x8xf32, #tpu.memory_space<vmem>>, vector<64x8xf32>,
    %35 = arith.subf %0, %33 : vector<64x8xf32>
    %36 = arith.mulf %0, %35 : vector<64x8xf32>
    %cst_14 = arith.constant dense<0.000000e+00> : vector<64xf32>
    %37 = vector.multi_reduction <add>, %36, %cst_14 [1] : vector<64x8xf32> to vector<64xf32>
    %38 = vector.shape_cast %37 : vector<64xf32> to vector<64x1xf32>
    %cst_15 = arith.constant dense<0.000000e+00> : vector<16xf32>
    %39 = vector.multi_reduction <add>, %32, %cst_15 [0] : vector<64x16xf32> to vector<16xf32>
    %40 = vector.shape_cast %39 : vector<16xf32> to vector<1x16xf32>
    %41 = vector.shape_cast %28 : vector<64x1xf32> to vector<1x64x1xf32>
    %cst_16 = arith.constant dense<0.000000e+00> : vector<1xf32>
    %42 = vector.multi_reduction <add>, %41, %cst_16 [1, 2] : vector<1x64x1xf32> to vector<1xf32>
    %43 = vector.shape_cast %42 : vector<1xf32> to vector<1x1x1xf32>
    %44 = vector.extract %43[0, 0, 0] : f32 from vector<1x1x1xf32>
    %45 = vector.broadcast %44 : f32 to vector<1x1xf32>
    %46 = vector.shape_cast %38 : vector<64x1xf32> to vector<1x64x1xf32>
    %cst_17 = arith.constant dense<0.000000e+00> : vector<1xf32>
    %47 = vector.multi_reduction <add>, %46, %cst_17 [1, 2] : vector<1x64x1xf32> to vector<1xf32>
    %48 = vector.shape_cast %47 : vector<1xf32> to vector<1x1x1xf32>
    %49 = vector.extract %48[0, 0, 0] : f32 from vector<1x1x1xf32>
    %50 = vector.broadcast %49 : f32 to vector<1x1xf32>
    %51 = vector.broadcast %2 : f32 to vector<1x1xf32>
    %52 = arith.mulf %51, %50 : vector<1x1xf32>
    %53 = tpu.iota {dimensions = array<i32: 0>} : vector<8x16xi32>
    %c0_i32 = arith.constant 0 : i32
    %54 = vector.broadcast %c0_i32 : i32 to vector<8x16xi32>
    %55 = arith.cmpi eq, %53, %54 : vector<8x16xi32>
    %cst_18 = arith.constant 0.000000e+00 : f32
    %56 = vector.shape_cast %40 : vector<1x16xf32> to vector<1x16xf32>
    %57 = vector.broadcast %56 : vector<1x16xf32> to vector<8x16xf32>
    %58 = vector.broadcast %cst_18 : f32 to vector<8x16xf32>
    %59 = arith.select %55, %57, %58 : vector<8x16xi1>, vector<8x16xf32>
    %c1_i32 = arith.constant 1 : i32
    %60 = vector.broadcast %c1_i32 : i32 to vector<8x16xi32>
    %61 = arith.cmpi eq, %53, %60 : vector<8x16xi32>
    %cst_19 = arith.constant 0.000000e+00 : f32
    %62 = vector.shape_cast %45 : vector<1x1xf32> to vector<1x1xf32>
    %63 = vector.broadcast %62 : vector<1x1xf32> to vector<8x16xf32>
    %64 = vector.broadcast %cst_19 : f32 to vector<8x16xf32>
    %65 = arith.select %61, %63, %64 : vector<8x16xi1>, vector<8x16xf32>
    %66 = arith.addf %59, %65 : vector<8x16xf32>
    %c2_i32 = arith.constant 2 : i32
    %67 = vector.broadcast %c2_i32 : i32 to vector<8x16xi32>
    %68 = arith.cmpi eq, %53, %67 : vector<8x16xi32>
    %cst_20 = arith.constant 0.000000e+00 : f32
    %69 = vector.shape_cast %52 : vector<1x1xf32> to vector<1x1xf32>
    %70 = vector.broadcast %69 : vector<1x1xf32> to vector<8x16xf32>
    %71 = vector.broadcast %cst_20 : f32 to vector<8x16xf32>
    %72 = arith.select %68, %70, %71 : vector<8x16xi1>, vector<8x16xf32>
    %73 = arith.addf %66, %72 : vector<8x16xf32>
    %74 = vector.shape_cast %73 : vector<8x16xf32> to vector<1x8x16xf32>
    %c0_21 = arith.constant 0 : index
    %c0_22 = arith.constant 0 : index
    %c0_23 = arith.constant 0 : index
    %75 = vector.load %arg5[%c0_21, %c0_22, %c0_23] : memref<1x8x16xf32, #tpu.memory_space<vmem>>, vector<1x8x16xf32>
    tpu.vector_store %arg5[%c0_21, %c0_22, %c0_23], %74 {strides = array<i32>} : memref<1x8x16xf32, #tpu.memory_space<vmem>>, vector<1x8x16xf32>,
    return
  }
  func.func @transform_0(%arg0: i32) -> (i32, i32) {
    %c0_i32 = arith.constant 0 : i32
    %c0_i32_0 = arith.constant 0 : i32
    return %arg0, %c0_i32 : i32, i32
  }
  func.func @transform_1(%arg0: i32) -> (i32, i32) {
    %c0_i32 = arith.constant 0 : i32
    %c0_i32_0 = arith.constant 0 : i32
    %c0_i32_1 = arith.constant 0 : i32
    return %c0_i32, %c0_i32_0 : i32, i32
  }
  func.func @transform_2(%arg0: i32) -> i32 {
    %c0_i32 = arith.constant 0 : i32
    %c0_i32_0 = arith.constant 0 : i32
    return %c0_i32 : i32
  }
  func.func @transform_3(%arg0: i32) -> (i32, i32) {
    %c0_i32 = arith.constant 0 : i32
    %c0_i32_0 = arith.constant 0 : i32
    return %arg0, %c0_i32 : i32, i32
  }
  func.func @transform_4(%arg0: i32) -> (i32, i32, i32) {
    %c0_i32 = arith.constant 0 : i32
    %c0_i32_0 = arith.constant 0 : i32
    %c0_i32_1 = arith.constant 0 : i32
    return %arg0, %c0_i32, %c0_i32_0 : i32, i32, i32
  }
}

</mosaic_0001>

<llo_original>
// kernel: tpu_custom_call.1
$region0: #{tpu_custom_call.1}
  #allocation0 [shape = 'u32[]', space=smem, size = 0x4, offset = 0x4, fixed_abs, tag = 'smem constant byte address 0x4 - core index']
  #allocation1 [shape = 'u32[72,128]{1,0:T(1,128)}', space=vmem, size = 0x9000, scoped, tag = 'internal scratch']
  #allocation2 [shape = 'f32[1]{0:T(128)S(6)}', space=smem, size = 0x200, scoped, tag = 'scoped memory for tpu_custom_call.1']
  %s0 = inlined_call_operand.vmem [shape: f32[64,8], index: 0, kind: input, shape index: {}]
  %s1 = inlined_call_operand.vmem [shape: f32[16,8], index: 1, kind: input, shape index: {}]
  %s2 = inlined_call_operand.<no memory space> [shape: f32[1], index: 2, kind: input, shape index: {}]
  %s3 = inlined_call_operand.vmem [shape: f32[64,8], index: 3, kind: output, shape index: {0}]
  %s4 = inlined_call_operand.hbm [shape: f32[1,8,16], index: 4, kind: output, shape index: {1}]
  %5 = xla_tuple %s3, %s4
  %s6 = sld [smem:[#allocation0]]
  $region30: #{tpu_custom_call.1} parent=0
    _
  %s8 = ssub.s32 1, %s6
  %s9 = scalar_select 0, %s8, %s6
  %10 = sst [smem:[#allocation2]] %s2
  $region1: #{tpu_custom_call.1} parent=0
    #allocation3 [shape = 'u8[4096]{0}', space=vmem, size = 0x1000, scoped, tag = 'output window, operand 1, single buffered']
    #allocation4 [shape = 's32[1]{0}', space=sflag, size = 0x4, scoped, tag = 'scoped memory for tpu_custom_call.1']
    %11 = vsyncpa [#allocation4], 0
    // Predicated region
    $region2: #{tpu_custom_call.1} parent=1 // pred_check
      _
    $region3: #{tpu_custom_call.1} parent=1 // pred_check_branch
      %13 = sbr.rel (0) target = $region5
    $region4: #{tpu_custom_call.1} parent=1 // pred_region
      _
    $region5: #{tpu_custom_call.1} parent=1 // pred_fallthru
      _
    // Predicated region
    $region6: #{tpu_custom_call.1} parent=1 // pred_check
      _
    $region7: #{tpu_custom_call.1} parent=1 // pred_check_branch
      %15 = sbr.rel (0) target = $region9
    $region8: #{tpu_custom_call.1} parent=1 // pred_region
      _
    $region9: #{tpu_custom_call.1} parent=1 // pred_fallthru
      _
    // Predicated region
    $region10: #{tpu_custom_call.1} parent=1 // pred_check
      _
    $region11: #{tpu_custom_call.1} parent=1 // pred_check_branch
      %17 = sbr.rel (0) target = $region13
    $region12: #{tpu_custom_call.1} parent=1 // pred_region
      _
    $region13: #{tpu_custom_call.1} parent=1 // pred_fallthru
      _
    %v18 = vld [vmem:[%s0] sm:$0xff]
    %v19 = vld [vmem:[%s0 + $0x8] sm:$0xff]
    %v20 = vld [vmem:[%s0 + $0x10] sm:$0xff]
    %v21 = vld [vmem:[%s0 + $0x18] sm:$0xff]
    %v22 = vld [vmem:[%s0 + $0x20] sm:$0xff]
    %v23 = vld [vmem:[%s0 + $0x28] sm:$0xff]
    %v24 = vld [vmem:[%s0 + $0x30] sm:$0xff]
    %v25 = vld [vmem:[%s0 + $0x38] sm:$0xff]
    %v26 = vld [vmem:[%s1] sm:$0xff]
    %v27 = vld [vmem:[%s1 + $0x8] sm:$0xff]
    %s28 = sld [smem:[#allocation2]]
    %v29 = vmul.f32 %v18, %v18
    %v30 = vmul.f32 %v19, %v19
    %v31 = vmul.f32 %v20, %v20
    %v32 = vmul.f32 %v21, %v21
    %v33 = vmul.f32 %v22, %v22
    %v34 = vmul.f32 %v23, %v23
    %v35 = vmul.f32 %v24, %v24
    %v36 = vmul.f32 %v25, %v25
    %vm37 = vcmask 64512
    %v38 = vsel %vm37, %v29, 0.0
    %39 = vadd.xlane.f32.xlu0 %v38
    %v40 = vpop.xlane.xlu0 %39
    %v41 = vsel %vm37, %v30, 0.0
    %42 = vadd.xlane.f32.xlu0 %v41
    %v43 = vpop.xlane.xlu0 %42
    %v44 = vsel %vm37, %v31, 0.0
    %45 = vadd.xlane.f32.xlu0 %v44
    %v46 = vpop.xlane.xlu0 %45
    %v47 = vsel %vm37, %v32, 0.0
    %48 = vadd.xlane.f32.xlu0 %v47
    %v49 = vpop.xlane.xlu0 %48
    %v50 = vsel %vm37, %v33, 0.0
    %51 = vadd.xlane.f32.xlu0 %v50
    %v52 = vpop.xlane.xlu0 %51
    %v53 = vsel %vm37, %v34, 0.0
    %54 = vadd.xlane.f32.xlu0 %v53
    %v55 = vpop.xlane.xlu0 %54
    %v56 = vsel %vm37, %v35, 0.0
    %57 = vadd.xlane.f32.xlu0 %v56
    %v58 = vpop.xlane.xlu0 %57
    %v59 = vsel %vm37, %v36, 0.0
    %60 = vadd.xlane.f32.xlu0 %v59
    %v61 = vpop.xlane.xlu0 %60
    %v62 = vmax.f32 %v40, 1e-24
    %v63 = vmax.f32 %v43, 1e-24
    %v64 = vmax.f32 %v46, 1e-24
    %v65 = vmax.f32 %v49, 1e-24
    %v66 = vmax.f32 %v52, 1e-24
    %v67 = vmax.f32 %v55, 1e-24
    %v68 = vmax.f32 %v58, 1e-24
    %v69 = vmax.f32 %v61, 1e-24
    %v70 = vrsqrt.pop %v62
    %v71 = vmul.f32 %v70, %v62
    %v72 = vmul.f32 %v71, %v70
    %v73 = vmul.f32 0.5, %v72
    %v74 = vsub.f32 1.5, %v73
    %v75 = vmul.f32 %v70, %v74
    %vm76 = vweird.f32 %v62
    %vm77 = vweird.f32 %v70
    %vm78 = vmor %vm76, %vm77
    %v79 = vsel %vm78, %v70, %v75
    %v80 = vrsqrt.pop %v63
    %v81 = vmul.f32 %v80, %v63
    %v82 = vmul.f32 %v81, %v80
    %v83 = vmul.f32 0.5, %v82
    %v84 = vsub.f32 1.5, %v83
    %v85 = vmul.f32 %v80, %v84
    %vm86 = vweird.f32 %v63
    %vm87 = vweird.f32 %v80
    %vm88 = vmor %vm86, %vm87
    %v89 = vsel %vm88, %v80, %v85
    %v90 = vrsqrt.pop %v64
    %v91 = vmul.f32 %v90, %v64
    %v92 = vmul.f32 %v91, %v90
    %v93 = vmul.f32 0.5, %v92
    %v94 = vsub.f32 1.5, %v93
    %v95 = vmul.f32 %v90, %v94
    %vm96 = vweird.f32 %v64
    %vm97 = vweird.f32 %v90
    %vm98 = vmor %vm96, %vm97
    %v99 = vsel %vm98, %v90, %v95
    %v100 = vrsqrt.pop %v65
    %v101 = vmul.f32 %v100, %v65
    %v102 = vmul.f32 %v101, %v100
    %v103 = vmul.f32 0.5, %v102
    %v104 = vsub.f32 1.5, %v103
    %v105 = vmul.f32 %v100, %v104
    %vm106 = vweird.f32 %v65
    %vm107 = vweird.f32 %v100
    %vm108 = vmor %vm106, %vm107
    %v109 = vsel %vm108, %v100, %v105
    %v110 = vrsqrt.pop %v66
    %v111 = vmul.f32 %v110, %v66
    %v112 = vmul.f32 %v111, %v110
    %v113 = vmul.f32 0.5, %v112
    %v114 = vsub.f32 1.5, %v113
    %v115 = vmul.f32 %v110, %v114
    %vm116 = vweird.f32 %v66
    %vm117 = vweird.f32 %v110
    %vm118 = vmor %vm116, %vm117
    %v119 = vsel %vm118, %v110, %v115
    %v120 = vrsqrt.pop %v67
    %v121 = vmul.f32 %v120, %v67
    %v122 = vmul.f32 %v121, %v120
    %v123 = vmul.f32 0.5, %v122
    %v124 = vsub.f32 1.5, %v123
    %v125 = vmul.f32 %v120, %v124
    %vm126 = vweird.f32 %v67
    %vm127 = vweird.f32 %v120
    %vm128 = vmor %vm126, %vm127
    %v129 = vsel %vm128, %v120, %v125
    %v130 = vrsqrt.pop %v68
    %v131 = vmul.f32 %v130, %v68
    %v132 = vmul.f32 %v131, %v130
    %v133 = vmul.f32 0.5, %v132
    %v134 = vsub.f32 1.5, %v133
    %v135 = vmul.f32 %v130, %v134
    %vm136 = vweird.f32 %v68
    %vm137 = vweird.f32 %v130
    %vm138 = vmor %vm136, %vm137
    %v139 = vsel %vm138, %v130, %v135
    %v140 = vrsqrt.pop %v69
    %v141 = vmul.f32 %v140, %v69
    %v142 = vmul.f32 %v141, %v140
    %v143 = vmul.f32 0.5, %v142
    %v144 = vsub.f32 1.5, %v143
    %v145 = vmul.f32 %v140, %v144
    %vm146 = vweird.f32 %v69
    %vm147 = vweird.f32 %v140
    %vm148 = vmor %vm146, %vm147
    %v149 = vsel %vm148, %v140, %v145
    %v150 = vstv %s28
    %v151 = vmul.f32 %v150, %v79
    %v152 = vmul.f32 %v150, %v89
    %v153 = vmul.f32 %v150, %v99
    %v154 = vmul.f32 %v150, %v109
    %v155 = vmul.f32 %v150, %v119
    %v156 = vmul.f32 %v150, %v129
    %v157 = vmul.f32 %v150, %v139
    %v158 = vmul.f32 %v150, %v149
    %v159 = vmul.f32 %v18, %v151
    %v160 = vmul.f32 %v19, %v152
    %v161 = vmul.f32 %v20, %v153
    %v162 = vmul.f32 %v21, %v154
    %v163 = vmul.f32 %v22, %v155
    %v164 = vmul.f32 %v23, %v156
    %v165 = vmul.f32 %v24, %v157
    %v166 = vmul.f32 %v25, %v158
    %v168 = vsel %vm37, %v159, 0
    %v171 = vsel %vm37, %v160, 0
    %v174 = vsel %vm37, %v161, 0
    %v177 = vsel %vm37, %v162, 0
    %v180 = vsel %vm37, %v163, 0
    %v183 = vsel %vm37, %v164, 0
    %v186 = vsel %vm37, %v165, 0
    %v189 = vsel %vm37, %v166, 0
    %v192 = vsel %vm37, %v26, 0
    %v195 = vsel %vm37, %v27, 0
    %197 = vmatpush.xpose.msra.mxu0 0.0
    %198 = vmatpush.xpose.msra.mxu0 0.0
    %199 = vmatpush.xpose.msra.mxu0 0.0
    %200 = vmatpush.xpose.msra.mxu0 0.0
    %201 = vmatpush.xpose.msra.mxu0 0.0
    %202 = vmatpush.xpose.msra.mxu0 0.0
    %203 = vmatpush.xpose.msra.mxu0 0.0
    %204 = vmatpush.xpose.msra.mxu0 0.0
    %205 = vmatpush.xpose.msra.mxu0 0.0
    %206 = vmatpush.xpose.msra.mxu0 0.0
    %207 = vmatpush.xpose.msra.mxu0 0.0
    %208 = vmatpush.xpose.msra.mxu0 0.0
    %209 = vmatpush.xpose.msra.mxu0 0.0
    %210 = vmatpush.xpose.msra.mxu0 0.0
    %211 = vmatpush.xpose.msra.mxu0 %v195
    %212 = vmatpush.xpose.msra.mxu0 %v192
    %213 = vmatmul.f32.gmra.mxu0 %v168
    %v214 = vpop.f32.mrf.mxu0
    %v215 = vadd.f32 0.0, %v214
    %216 = vmatmul.f32.gmra.mxu0 %v171
    %v217 = vpop.f32.mrf.mxu0
    %v218 = vadd.f32 0.0, %v217
    %219 = vmatmul.f32.gmra.mxu0 %v174
    %v220 = vpop.f32.mrf.mxu0
    %v221 = vadd.f32 0.0, %v220
    %222 = vmatmul.f32.gmra.mxu0 %v177
    %v223 = vpop.f32.mrf.mxu0
    %v224 = vadd.f32 0.0, %v223
    %225 = vmatmul.f32.gmra.mxu0 %v180
    %v226 = vpop.f32.mrf.mxu0
    %v227 = vadd.f32 0.0, %v226
    %228 = vmatmul.f32.gmra.mxu0 %v183
    %v229 = vpop.f32.mrf.mxu0
    %v230 = vadd.f32 0.0, %v229
    %231 = vmatmul.f32.gmra.mxu0 %v186
    %v232 = vpop.f32.mrf.mxu0
    %v233 = vadd.f32 0.0, %v232
    %234 = vmatmul.f32.gmra.mxu0 %v189
    %v235 = vpop.f32.mrf.mxu0
    %v236 = vadd.f32 0.0, %v235
    %237 = vdwg.mxu0
    %vm238 = vcmask 130048
    %v239 = vsel %vm238, %v215, -inf
    %240 = vmax.xlane.f32.xlu0 %v239
    %v241 = vpop.xlane.xlu0 %240
    %v242 = vsel %vm238, %v218, -inf
    %243 = vmax.xlane.f32.xlu0 %v242
    %v244 = vpop.xlane.xlu0 %243
    %v245 = vsel %vm238, %v221, -inf
    %246 = vmax.xlane.f32.xlu0 %v245
    %v247 = vpop.xlane.xlu0 %246
    %v248 = vsel %vm238, %v224, -inf
    %249 = vmax.xlane.f32.xlu0 %v248
    %v250 = vpop.xlane.xlu0 %249
    %v251 = vsel %vm238, %v227, -inf
    %252 = vmax.xlane.f32.xlu0 %v251
    %v253 = vpop.xlane.xlu0 %252
    %v254 = vsel %vm238, %v230, -inf
    %255 = vmax.xlane.f32.xlu0 %v254
    %v256 = vpop.xlane.xlu0 %255
    %v257 = vsel %vm238, %v233, -inf
    %258 = vmax.xlane.f32.xlu0 %v257
    %v259 = vpop.xlane.xlu0 %258
    %v260 = vsel %vm238, %v236, -inf
    %261 = vmax.xlane.f32.xlu0 %v260
    %v262 = vpop.xlane.xlu0 %261
    %v263 = vsub.f32 %v215, %v241
    %v264 = vsub.f32 %v218, %v244
    %v265 = vsub.f32 %v221, %v247
    %v266 = vsub.f32 %v224, %v250
    %v267 = vsub.f32 %v227, %v253
    %v268 = vsub.f32 %v230, %v256
    %v269 = vsub.f32 %v233, %v259
    %v270 = vsub.f32 %v236, %v262
    %v271 = vmul.f32 %v263, 1.442695
    %v272 = vpow.pop %v271
    %v273 = vmul.f32 %v264, 1.442695
    %v274 = vpow.pop %v273
    %v275 = vmul.f32 %v265, 1.442695
    %v276 = vpow.pop %v275
    %v277 = vmul.f32 %v266, 1.442695
    %v278 = vpow.pop %v277
    %v279 = vmul.f32 %v267, 1.442695
    %v280 = vpow.pop %v279
    %v281 = vmul.f32 %v268, 1.442695
    %v282 = vpow.pop %v281
    %v283 = vmul.f32 %v269, 1.442695
    %v284 = vpow.pop %v283
    %v285 = vmul.f32 %v270, 1.442695
    %v286 = vpow.pop %v285
    %v287 = vsel %vm238, %v272, 0.0
    %288 = vadd.xlane.f32.xlu0 %v287
    %v289 = vpop.xlane.xlu0 %288
    %v290 = vsel %vm238, %v274, 0.0
    %291 = vadd.xlane.f32.xlu0 %v290
    %v292 = vpop.xlane.xlu0 %291
    %v293 = vsel %vm238, %v276, 0.0
    %294 = vadd.xlane.f32.xlu0 %v293
    %v295 = vpop.xlane.xlu0 %294
    %v296 = vsel %vm238, %v278, 0.0
    %297 = vadd.xlane.f32.xlu0 %v296
    %v298 = vpop.xlane.xlu0 %297
    %v299 = vsel %vm238, %v280, 0.0
    %300 = vadd.xlane.f32.xlu0 %v299
    %v301 = vpop.xlane.xlu0 %300
    %v302 = vsel %vm238, %v282, 0.0
    %303 = vadd.xlane.f32.xlu0 %v302
    %v304 = vpop.xlane.xlu0 %303
    %v305 = vsel %vm238, %v284, 0.0
    %306 = vadd.xlane.f32.xlu0 %v305
    %v307 = vpop.xlane.xlu0 %306
    %v308 = vsel %vm238, %v286, 0.0
    %309 = vadd.xlane.f32.xlu0 %v308
    %v310 = vpop.xlane.xlu0 %309
    %v311 = vrcp.pop %v289
    %v312 = vmul.f32 %v289, %v311
    %v313 = vsub.f32 1.0, %v312
    %v314 = vmul.f32 %v311, %v313
    %v315 = vadd.f32 %v311, %v314
    %vm316 = vweird.f32 %v289
    %vm317 = vweird.f32 %v311
    %vm318 = vmor %vm316, %vm317
    %v319 = vsel %vm318, %v311, %v315
    %v320 = vand.u32 2147483647, %v289
    %vm321 = vcmp.eq.f32.partialorder %v320, 8.507059e+37
    %v322 = vand.u32 %v289, 2147483648
    %v323 = vor.u32 1.1754944e-38, %v322
    %v324 = vsel %vm321, %v323, %v319
    %v325 = vmul.f32 1.0, %v324
    %v326 = vrcp.pop %v292
    %v327 = vmul.f32 %v292, %v326
    %v328 = vsub.f32 1.0, %v327
    %v329 = vmul.f32 %v326, %v328
    %v330 = vadd.f32 %v326, %v329
    %vm331 = vweird.f32 %v292
    %vm332 = vweird.f32 %v326
    %vm333 = vmor %vm331, %vm332
    %v334 = vsel %vm333, %v326, %v330
    %v335 = vand.u32 2147483647, %v292
    %vm336 = vcmp.eq.f32.partialorder %v335, 8.507059e+37
    %v337 = vand.u32 %v292, 2147483648
    %v338 = vor.u32 1.1754944e-38, %v337
    %v339 = vsel %vm336, %v338, %v334
    %v340 = vmul.f32 1.0, %v339
    %v341 = vrcp.pop %v295
    %v342 = vmul.f32 %v295, %v341
    %v343 = vsub.f32 1.0, %v342
    %v344 = vmul.f32 %v341, %v343
    %v345 = vadd.f32 %v341, %v344
    %vm346 = vweird.f32 %v295
    %vm347 = vweird.f32 %v341
    %vm348 = vmor %vm346, %vm347
    %v349 = vsel %vm348, %v341, %v345
    %v350 = vand.u32 2147483647, %v295
    %vm351 = vcmp.eq.f32.partialorder %v350, 8.507059e+37
    %v352 = vand.u32 %v295, 2147483648
    %v353 = vor.u32 1.1754944e-38, %v352
    %v354 = vsel %vm351, %v353, %v349
    %v355 = vmul.f32 1.0, %v354
    %v356 = vrcp.pop %v298
    %v357 = vmul.f32 %v298, %v356
    %v358 = vsub.f32 1.0, %v357
    %v359 = vmul.f32 %v356, %v358
    %v360 = vadd.f32 %v356, %v359
    %vm361 = vweird.f32 %v298
    %vm362 = vweird.f32 %v356
    %vm363 = vmor %vm361, %vm362
    %v364 = vsel %vm363, %v356, %v360
    %v365 = vand.u32 2147483647, %v298
    %vm366 = vcmp.eq.f32.partialorder %v365, 8.507059e+37
    %v367 = vand.u32 %v298, 2147483648
    %v368 = vor.u32 1.1754944e-38, %v367
    %v369 = vsel %vm366, %v368, %v364
    %v370 = vmul.f32 1.0, %v369
    %v371 = vrcp.pop %v301
    %v372 = vmul.f32 %v301, %v371
    %v373 = vsub.f32 1.0, %v372
    %v374 = vmul.f32 %v371, %v373
    %v375 = vadd.f32 %v371, %v374
    %vm376 = vweird.f32 %v301
    %vm377 = vweird.f32 %v371
    %vm378 = vmor %vm376, %vm377
    %v379 = vsel %vm378, %v371, %v375
    %v380 = vand.u32 2147483647, %v301
    %vm381 = vcmp.eq.f32.partialorder %v380, 8.507059e+37
    %v382 = vand.u32 %v301, 2147483648
    %v383 = vor.u32 1.1754944e-38, %v382
    %v384 = vsel %vm381, %v383, %v379
    %v385 = vmul.f32 1.0, %v384
    %v386 = vrcp.pop %v304
    %v387 = vmul.f32 %v304, %v386
    %v388 = vsub.f32 1.0, %v387
    %v389 = vmul.f32 %v386, %v388
    %v390 = vadd.f32 %v386, %v389
    %vm391 = vweird.f32 %v304
    %vm392 = vweird.f32 %v386
    %vm393 = vmor %vm391, %vm392
    %v394 = vsel %vm393, %v386, %v390
    %v395 = vand.u32 2147483647, %v304
    %vm396 = vcmp.eq.f32.partialorder %v395, 8.507059e+37
    %v397 = vand.u32 %v304, 2147483648
    %v398 = vor.u32 1.1754944e-38, %v397
    %v399 = vsel %vm396, %v398, %v394
    %v400 = vmul.f32 1.0, %v399
    %v401 = vrcp.pop %v307
    %v402 = vmul.f32 %v307, %v401
    %v403 = vsub.f32 1.0, %v402
    %v404 = vmul.f32 %v401, %v403
    %v405 = vadd.f32 %v401, %v404
    %vm406 = vweird.f32 %v307
    %vm407 = vweird.f32 %v401
    %vm408 = vmor %vm406, %vm407
    %v409 = vsel %vm408, %v401, %v405
    %v410 = vand.u32 2147483647, %v307
    %vm411 = vcmp.eq.f32.partialorder %v410, 8.507059e+37
    %v412 = vand.u32 %v307, 2147483648
    %v413 = vor.u32 1.1754944e-38, %v412
    %v414 = vsel %vm411, %v413, %v409
    %v415 = vmul.f32 1.0, %v414
    %v416 = vrcp.pop %v310
    %v417 = vmul.f32 %v310, %v416
    %v418 = vsub.f32 1.0, %v417
    %v419 = vmul.f32 %v416, %v418
    %v420 = vadd.f32 %v416, %v419
    %vm421 = vweird.f32 %v310
    %vm422 = vweird.f32 %v416
    %vm423 = vmor %vm421, %vm422
    %v424 = vsel %vm423, %v416, %v420
    %v425 = vand.u32 2147483647, %v310
    %vm426 = vcmp.eq.f32.partialorder %v425, 8.507059e+37
    %v427 = vand.u32 %v310, 2147483648
    %v428 = vor.u32 1.1754944e-38, %v427
    %v429 = vsel %vm426, %v428, %v424
    %v430 = vmul.f32 1.0, %v429
    %v431 = vmul.f32 %v272, %v263
    %v432 = vmul.f32 %v274, %v264
    %v433 = vmul.f32 %v276, %v265
    %v434 = vmul.f32 %v278, %v266
    %v435 = vmul.f32 %v280, %v267
    %v436 = vmul.f32 %v282, %v268
    %v437 = vmul.f32 %v284, %v269
    %v438 = vmul.f32 %v286, %v270
    %v439 = vsel %vm238, %v431, 0.0
    %440 = vadd.xlane.f32.xlu0 %v439
    %v441 = vpop.xlane.xlu0 %440
    %v442 = vsel %vm238, %v432, 0.0
    %443 = vadd.xlane.f32.xlu0 %v442
    %v444 = vpop.xlane.xlu0 %443
    %v445 = vsel %vm238, %v433, 0.0
    %446 = vadd.xlane.f32.xlu0 %v445
    %v447 = vpop.xlane.xlu0 %446
    %v448 = vsel %vm238, %v434, 0.0
    %449 = vadd.xlane.f32.xlu0 %v448
    %v450 = vpop.xlane.xlu0 %449
    %v451 = vsel %vm238, %v435, 0.0
    %452 = vadd.xlane.f32.xlu0 %v451
    %v453 = vpop.xlane.xlu0 %452
    %v454 = vsel %vm238, %v436, 0.0
    %455 = vadd.xlane.f32.xlu0 %v454
    %v456 = vpop.xlane.xlu0 %455
    %v457 = vsel %vm238, %v437, 0.0
    %458 = vadd.xlane.f32.xlu0 %v457
    %v459 = vpop.xlane.xlu0 %458
    %v460 = vsel %vm238, %v438, 0.0
    %461 = vadd.xlane.f32.xlu0 %v460
    %v462 = vpop.xlane.xlu0 %461
    %v463 = vmul.f32 %v441, %v325
    %v464 = vmul.f32 %v444, %v340
    %v465 = vmul.f32 %v447, %v355
    %v466 = vmul.f32 %v450, %v370
    %v467 = vmul.f32 %v453, %v385
    %v468 = vmul.f32 %v456, %v400
    %v469 = vmul.f32 %v459, %v415
    %v470 = vmul.f32 %v462, %v430
    %v471 = vlog2.pop %v289
    %v472 = vmul.f32 %v471, 0.6931472
    %v473 = vlog2.pop %v292
    %v474 = vmul.f32 %v473, 0.6931472
    %v475 = vlog2.pop %v295
    %v476 = vmul.f32 %v475, 0.6931472
    %v477 = vlog2.pop %v298
    %v478 = vmul.f32 %v477, 0.6931472
    %v479 = vlog2.pop %v301
    %v480 = vmul.f32 %v479, 0.6931472
    %v481 = vlog2.pop %v304
    %v482 = vmul.f32 %v481, 0.6931472
    %v483 = vlog2.pop %v307
    %v484 = vmul.f32 %v483, 0.6931472
    %v485 = vlog2.pop %v310
    %v486 = vmul.f32 %v485, 0.6931472
    %v487 = vsub.f32 %v463, %v472
    %v488 = vsub.f32 %v464, %v474
    %v489 = vsub.f32 %v465, %v476
    %v490 = vsub.f32 %v466, %v478
    %v491 = vsub.f32 %v467, %v480
    %v492 = vsub.f32 %v468, %v482
    %v493 = vsub.f32 %v469, %v484
    %v494 = vsub.f32 %v470, %v486
    %vm495 = vcmp.eq.f32.partialorder %v263, 0.0
    %vm496 = vcmp.eq.f32.partialorder %v264, 0.0
    %vm497 = vcmp.eq.f32.partialorder %v265, 0.0
    %vm498 = vcmp.eq.f32.partialorder %v266, 0.0
    %vm499 = vcmp.eq.f32.partialorder %v267, 0.0
    %vm500 = vcmp.eq.f32.partialorder %v268, 0.0
    %vm501 = vcmp.eq.f32.partialorder %v269, 0.0
    %vm502 = vcmp.eq.f32.partialorder %v270, 0.0
    %v503 = vsel %vm495, 1, 0
    %v504 = vsel %vm496, 1, 0
    %v505 = vsel %vm497, 1, 0
    %v506 = vsel %vm498, 1, 0
    %v507 = vsel %vm499, 1, 0
    %v508 = vsel %vm500, 1, 0
    %v509 = vsel %vm501, 1, 0
    %v510 = vsel %vm502, 1, 0
    %v511 = vcvt.s32.f32 %v503
    %v512 = vcvt.s32.f32 %v504
    %v513 = vcvt.s32.f32 %v505
    %v514 = vcvt.s32.f32 %v506
    %v515 = vcvt.s32.f32 %v507
    %v516 = vcvt.s32.f32 %v508
    %v517 = vcvt.s32.f32 %v509
    %v518 = vcvt.s32.f32 %v510
    %v520 = vsel %vm238, %v511, 0
    %v523 = vsel %vm238, %v512, 0
    %v526 = vsel %vm238, %v513, 0
    %v529 = vsel %vm238, %v514, 0
    %v532 = vsel %vm238, %v515, 0
    %v535 = vsel %vm238, %v516, 0
    %v538 = vsel %vm238, %v517, 0
    %v541 = vsel %vm238, %v518, 0
    %543 = vmatpush.msra.mxu0 0.0
    %544 = vmatpush.msra.mxu0 0.0
    %545 = vmatpush.msra.mxu0 0.0
    %546 = vmatpush.msra.mxu0 0.0
    %547 = vmatpush.msra.mxu0 0.0
    %548 = vmatpush.msra.mxu0 0.0
    %549 = vmatpush.msra.mxu0 0.0
    %550 = vmatpush.msra.mxu0 0.0
    %551 = vmatpush.msra.mxu0 0.0
    %552 = vmatpush.msra.mxu0 0.0
    %553 = vmatpush.msra.mxu0 0.0
    %554 = vmatpush.msra.mxu0 0.0
    %555 = vmatpush.msra.mxu0 0.0
    %556 = vmatpush.msra.mxu0 0.0
    %557 = vmatpush.msra.mxu0 %v27
    %558 = vmatpush.msra.mxu0 %v26
    %559 = vmatmul.f32.gmra.mxu0 %v520
    %v560 = vpop.f32.mrf.mxu0
    %v561 = vadd.f32 0.0, %v560
    %562 = vmatmul.f32.gmra.mxu0 %v523
    %v563 = vpop.f32.mrf.mxu0
    %v564 = vadd.f32 0.0, %v563
    %565 = vmatmul.f32.gmra.mxu0 %v526
    %v566 = vpop.f32.mrf.mxu0
    %v567 = vadd.f32 0.0, %v566
    %568 = vmatmul.f32.gmra.mxu0 %v529
    %v569 = vpop.f32.mrf.mxu0
    %v570 = vadd.f32 0.0, %v569
    %571 = vmatmul.f32.gmra.mxu0 %v532
    %v572 = vpop.f32.mrf.mxu0
    %v573 = vadd.f32 0.0, %v572
    %574 = vmatmul.f32.gmra.mxu0 %v535
    %v575 = vpop.f32.mrf.mxu0
    %v576 = vadd.f32 0.0, %v575
    %577 = vmatmul.f32.gmra.mxu0 %v538
    %v578 = vpop.f32.mrf.mxu0
    %v579 = vadd.f32 0.0, %v578
    %580 = vmatmul.f32.gmra.mxu0 %v541
    %v581 = vpop.f32.mrf.mxu0
    %v582 = vadd.f32 0.0, %v581
    %583 = vdwg.mxu0
    %584 = vst.msk [vmem:[%s3] sm:$0xff] %vm37, %v561
    %585 = vst.msk [vmem:[%s3 + $0x8] sm:$0xff] %vm37, %v564
    %586 = vst.msk [vmem:[%s3 + $0x10] sm:$0xff] %vm37, %v567
    %587 = vst.msk [vmem:[%s3 + $0x18] sm:$0xff] %vm37, %v570
    %588 = vst.msk [vmem:[%s3 + $0x20] sm:$0xff] %vm37, %v573
    %589 = vst.msk [vmem:[%s3 + $0x28] sm:$0xff] %vm37, %v576
    %590 = vst.msk [vmem:[%s3 + $0x30] sm:$0xff] %vm37, %v579
    %591 = vst.msk [vmem:[%s3 + $0x38] sm:$0xff] %vm37, %v582
    %v592 = vsub.f32 %v18, %v561
    %v593 = vsub.f32 %v19, %v564
    %v594 = vsub.f32 %v20, %v567
    %v595 = vsub.f32 %v21, %v570
    %v596 = vsub.f32 %v22, %v573
    %v597 = vsub.f32 %v23, %v576
    %v598 = vsub.f32 %v24, %v579
    %v599 = vsub.f32 %v25, %v582
    %v600 = vmul.f32 %v18, %v592
    %v601 = vmul.f32 %v19, %v593
    %v602 = vmul.f32 %v20, %v594
    %v603 = vmul.f32 %v21, %v595
    %v604 = vmul.f32 %v22, %v596
    %v605 = vmul.f32 %v23, %v597
    %v606 = vmul.f32 %v24, %v598
    %v607 = vmul.f32 %v25, %v599
    %v608 = vsel %vm37, %v600, 0.0
    %609 = vadd.xlane.f32.xlu0 %v608
    %v610 = vpop.xlane.xlu0 %609
    %v611 = vsel %vm37, %v601, 0.0
    %612 = vadd.xlane.f32.xlu0 %v611
    %v613 = vpop.xlane.xlu0 %612
    %v614 = vsel %vm37, %v602, 0.0
    %615 = vadd.xlane.f32.xlu0 %v614
    %v616 = vpop.xlane.xlu0 %615
    %v617 = vsel %vm37, %v603, 0.0
    %618 = vadd.xlane.f32.xlu0 %v617
    %v619 = vpop.xlane.xlu0 %618
    %v620 = vsel %vm37, %v604, 0.0
    %621 = vadd.xlane.f32.xlu0 %v620
    %v622 = vpop.xlane.xlu0 %621
    %v623 = vsel %vm37, %v605, 0.0
    %624 = vadd.xlane.f32.xlu0 %v623
    %v625 = vpop.xlane.xlu0 %624
    %v626 = vsel %vm37, %v606, 0.0
    %627 = vadd.xlane.f32.xlu0 %v626
    %v628 = vpop.xlane.xlu0 %627
    %v629 = vsel %vm37, %v607, 0.0
    %630 = vadd.xlane.f32.xlu0 %v629
    %v631 = vpop.xlane.xlu0 %630
    %v632 = vsel %vm238, %v511, 0.0
    %v633 = vsel %vm238, %v512, 0.0
    %v634 = vadd.f32 %v632, %v633
    %v635 = vsel %vm238, %v513, 0.0
    %v636 = vadd.f32 %v634, %v635
    %v637 = vsel %vm238, %v514, 0.0
    %v638 = vadd.f32 %v636, %v637
    %v639 = vsel %vm238, %v515, 0.0
    %v640 = vadd.f32 %v638, %v639
    %v641 = vsel %vm238, %v516, 0.0
    %v642 = vadd.f32 %v640, %v641
    %v643 = vsel %vm238, %v517, 0.0
    %v644 = vadd.f32 %v642, %v643
    %v645 = vsel %vm238, %v518, 0.0
    %v646 = vadd.f32 %v644, %v645
    %v647 = vrot.slane %v646, 4
    %v648 = vadd.f32 %v646, %v647
    %v649 = vrot.slane %v648, 2
    %v650 = vadd.f32 %v648, %v649
    %v651 = vrot.slane %v650, 1
    %v652 = vadd.f32 %v650, %v651
    %vm653 = vcmask 7168
    %v654 = vsel %vm653, %v487, 0.0
    %v655 = vsel %vm653, %v488, 0.0
    %v656 = vadd.f32 %v654, %v655
    %v657 = vsel %vm653, %v489, 0.0
    %v658 = vadd.f32 %v656, %v657
    %v659 = vsel %vm653, %v490, 0.0
    %v660 = vadd.f32 %v658, %v659
    %v661 = vsel %vm653, %v491, 0.0
    %v662 = vadd.f32 %v660, %v661
    %v663 = vsel %vm653, %v492, 0.0
    %v664 = vadd.f32 %v662, %v663
    %v665 = vsel %vm653, %v493, 0.0
    %v666 = vadd.f32 %v664, %v665
    %v667 = vsel %vm653, %v494, 0.0
    %v668 = vadd.f32 %v666, %v667
    %669 = vadd.xlane.f32.xlu0 %v668
    %v670 = vpop.xlane.xlu0 %669
    %v671 = vrot.slane %v670, 4
    %v672 = vadd.f32 %v670, %v671
    %v673 = vrot.slane %v672, 2
    %v674 = vadd.f32 %v672, %v673
    %v675 = vrot.slane %v674, 1
    %v676 = vadd.f32 %v674, %v675
    %s677 = vtos %v676
    %v678 = vsel %vm653, %v610, 0.0
    %v679 = vsel %vm653, %v613, 0.0
    %v680 = vadd.f32 %v678, %v679
    %v681 = vsel %vm653, %v616, 0.0
    %v682 = vadd.f32 %v680, %v681
    %v683 = vsel %vm653, %v619, 0.0
    %v684 = vadd.f32 %v682, %v683
    %v685 = vsel %vm653, %v622, 0.0
    %v686 = vadd.f32 %v684, %v685
    %v687 = vsel %vm653, %v625, 0.0
    %v688 = vadd.f32 %v686, %v687
    %v689 = vsel %vm653, %v628, 0.0
    %v690 = vadd.f32 %v688, %v689
    %v691 = vsel %vm653, %v631, 0.0
    %v692 = vadd.f32 %v690, %v691
    %693 = vadd.xlane.f32.xlu0 %v692
    %v694 = vpop.xlane.xlu0 %693
    %v695 = vrot.slane %v694, 4
    %v696 = vadd.f32 %v694, %v695
    %v697 = vrot.slane %v696, 2
    %v698 = vadd.f32 %v696, %v697
    %v699 = vrot.slane %v698, 1
    %v700 = vadd.f32 %v698, %v699
    %s701 = vtos %v700
    %v702 = vstv %s701
    %v703 = vmul.f32 %v150, %v702
    %v704 = vlaneseq
    %v705 = vshrl.u32 %v704, 7
    %vm706 = vcmp.eq.s32.totalorder %v705, 0
    %v707 = vsel %vm706, %v652, 0.0
    %vm708 = vcmp.eq.s32.totalorder %v705, 1
    %v709 = vstv %s677
    %v710 = vsel %vm708, %v709, 0.0
    %v711 = vadd.f32 %v707, %v710
    %vm712 = vcmp.eq.s32.totalorder %v705, 2
    %v713 = vsel %vm712, %v703, 0.0
    %v714 = vadd.f32 %v711, %v713
    %715 = vst.msk [vmem:[#allocation3] sm:$0xff] %vm238, %v714
    // Predicated region
    $region14: #{tpu_custom_call.1} parent=1 // pred_check
      _
    $region15: #{tpu_custom_call.1} parent=1 // pred_check_branch
      %717 = sbr.rel (0) target = $region17
    $region16: #{tpu_custom_call.1} parent=1 // pred_region
      _
    $region17: #{tpu_custom_call.1} parent=1 // pred_fallthru
      _
    // Predicated region
    $region18: #{tpu_custom_call.1} parent=1 // pred_check
      _
    $region19: #{tpu_custom_call.1} parent=1 // pred_check_branch
      %719 = sbr.rel (0) target = $region21
    $region20: #{tpu_custom_call.1} parent=1 // pred_region
      %721 = vsyncadd [#allocation4], 0
      %s723 = sshll.u32 [#allocation3], 4
      %s724 = int_to_ptr.vmem [resolvable:$true] %s723
      %s725 = sshll.u32 %s4, 4
      %s726 = int_to_ptr.hbm [resolvable:$true] %s725
      %728 = dma.vmem_to_hbm [thread:$0]  %s724, 128, %s726, [#allocation4]
    $region21: #{tpu_custom_call.1} parent=1 // pred_fallthru
      _
    // Predicated region
    $region22: #{tpu_custom_call.1} parent=1 // pred_check
      _
    $region23: #{tpu_custom_call.1} parent=1 // pred_check_branch
      %730 = sbr.rel (0) target = $region25
    $region24: #{tpu_custom_call.1} parent=1 // pred_region
      _
    $region25: #{tpu_custom_call.1} parent=1 // pred_fallthru
      _
    // Predicated region
    $region26: #{tpu_custom_call.1} parent=1 // pred_check
      _
    $region27: #{tpu_custom_call.1} parent=1 // pred_check_branch
      %732 = sbr.rel (0) target = $region29
    $region28: #{tpu_custom_call.1} parent=1 // pred_region
      %734 = dma.done [#allocation4], 128
    $region29: #{tpu_custom_call.1} parent=1 // pred_fallthru
      _
    %735 = vsyncpa [#allocation4], 1

</llo_original>
